<compile_context>
chip_gen: v7x
topology: tpu7x:2x2x1
jax: 0.10.0
libtpu: 0.0.40
codegen_flags: <defaults>
</compile_context>

<pallas_src>
import functools

import jax
import jax.numpy as jnp
from jax.experimental import pallas as pl
from jax.experimental.pallas import tpu as pltpu


def _temporal_block_kernel(*refs, K, dil, pad, W, block_h, n_h_tiles):
    if n_h_tiles > 1:
        x_ref, xprev_ref, w1_ref, b1_ref, w2_ref, b2_ref, o_ref = refs
    else:
        x_ref, w1_ref, b1_ref, w2_ref, b2_ref, o_ref = refs
        xprev_ref = None

    t = pl.program_id(1)               # H-tile index
    x = x_ref[0]                       # (C, block_h*W) f32; lanes = flattened (H, W)
    C = x.shape[0]

    def conv_layer(inp, w_ref, b_ref, out_lanes):
        """Causal (K,1) conv + Chomp + bias + ReLU on a lane-flattened tile.

        inp: (C_in, in_lanes) f32,  w_ref: (C_out, K*C_in) bf16,
        out: (C_out, out_lanes) f32 with out_lanes = in_lanes - pad*W.
        """
        in_lanes = inp.shape[1]
        if pad:
            # Width: Conv2d pads W by `pad` on both sides and Chomp2d drops the
            # last 2*pad cols => output col w reads input col (w-pad), 0 if w<pad.
            shifted = jnp.concatenate(
                [jnp.zeros((inp.shape[0], pad), inp.dtype),
                 inp[:, :in_lanes - pad]], axis=1)
            col = jax.lax.broadcasted_iota(jnp.int32, (1, in_lanes), 1) % W
            xw = jnp.where(col >= pad, shifted, 0.0)
        else:
            xw = inp
        xw = xw.astype(jnp.bfloat16)
        # Dilated causal H taps: tap k reads row (r + dil*k) -> a static lane
        # slice at offset dil*k*W.  Stack them so ONE MXU dot covers the whole
        # (K, C_in) contraction (taps folded into the contraction dim).
        taps = [xw[:, dil * k * W: dil * k * W + out_lanes] for k in range(K)]
        a = jnp.concatenate(taps, axis=0) if K > 1 else taps[0]  # (K*C_in, out_lanes)
        y = jnp.dot(w_ref[...], a, preferred_element_type=jnp.float32)
        return jnp.maximum(y + b_ref[...], 0.0)      # bias once, in the epilogue

    # ---- input tile plus its 2*pad-row causal halo ----------------------------
    if pad:
        halo_lanes = 2 * pad * W
        if n_h_tiles > 1:
            halo = xprev_ref[0, :, block_h * W - halo_lanes:]
            halo = jnp.where(t != 0, halo, 0.0)      # global rows < 0 are zeros
        else:
            halo = jnp.zeros((C, halo_lanes), jnp.float32)
        ext_x = jnp.concatenate([halo, x], axis=1)   # rows [t*TH - 2p, (t+1)*TH)
    else:
        ext_x = x

    # ---- conv1 -> chomp1 -> relu1 ---------------------------------------------
    # TODO(synk): nn.Dropout is identity at inference; train-mode RNG dropout is
    # not implemented in-kernel.
    l1_lanes = (block_h + pad) * W                   # out1 rows [t*TH - p, (t+1)*TH)
    out1 = conv_layer(ext_x, w1_ref, b1_ref, l1_lanes)
    if pad:
        # out1 rows with global index < 0 are conv2's zero padding, NOT
        # conv1(zeros) (bias+ReLU would make them non-zero) -> zero them on tile 0.
        lane = jax.lax.broadcasted_iota(jnp.int32, (1, l1_lanes), 1)
        out1 = jnp.where(jnp.logical_or(t != 0, lane >= pad * W), out1, 0.0)

    # ---- conv2 -> chomp2 -> relu2 -> residual -> relu -------------------------
    out2 = conv_layer(out1, w2_ref, b2_ref, block_h * W)
    o_ref[0] = jnp.maximum(out2 + x, 0.0)


def _pick_block_h(N, C, H, W, K, pad, budget_bytes=8 * 1024 * 1024):
    """Pick the H-tile height.

    Largest divisor of H whose per-step working set stays well inside the most
    constrained VMEM budget (v7x: 64 MiB physical / 32 MiB default scoped),
    keeping the block's lane dim (block_h*W) a multiple of 128 (lane-dense,
    unmasked stores) and block_h >= 2*pad so the halo fits in one previous
    tile.  If that leaves < 4 total grid steps, step down so the software
    pipeline (and v7x's two TensorCores) have parallel work.
    """
    cands = [d for d in range(1, H + 1)
             if H % d == 0
             and ((d * W) % 128 == 0 or d == H)
             and (d >= 2 * pad or d == H)]
    def est(d):  # rough per-step VMEM bytes: x/out blocks + ext/im2col temporaries
        return (d + 2 * pad) * W * C * 4 * (4 + 2 * K)
    fitting = [d for d in cands if est(d) <= budget_bytes] or [min(cands, key=est)]
    block_h = max(fitting)
    smaller = sorted(d for d in fitting if d < block_h)
    while N * (H // block_h) < 4 and smaller:
        block_h = smaller.pop()
    return block_h


def temporal_block_2d(x_nchw, w1, b1, w2, b2, *, kernel_size, dilation,
                      padding, stride=1, block_h=None):
    """Fused TemporalBlock2D forward.

    x_nchw: (N, C, H, W) float32 (torch layout); w1/w2: (C, C, K, 1) OIHW;
    b1/b2: (C,).  The module has no downsample conv, so n_inputs == n_outputs.
    """
    assert stride == 1, "residual add requires stride 1"
    assert padding == dilation * (kernel_size - 1), "TCN causal padding"
    N, C, H, W = x_nchw.shape
    K = kernel_size
    assert w1.shape == (C, C, K, 1) and w2.shape == (C, C, K, 1), \
        "no downsample path: n_inputs must equal n_outputs"

    if block_h is None:
        block_h = _pick_block_h(N, C, H, W, K, padding)
    assert H % block_h == 0
    n_h_tiles = H // block_h
    assert n_h_tiles == 1 or block_h >= 2 * padding, \
        "halo must fit in the previous H-tile"
    assert block_h == H or (block_h * W) % 128 == 0, \
        "tile lane dim must stay a multiple of 128"

    # Free reshapes only -- no NCHW<->NHWC transposes: lanes = flattened (H, W).
    hw = H * W
    x_flat = x_nchw.reshape(N, C, hw).astype(jnp.float32)

    # Fold the K taps into the matmul contraction: (C_out, K*C_in), bf16 for MXU.
    def fold_w(w):
        return jnp.transpose(w[:, :, :, 0], (0, 2, 1)).reshape(C, K * C).astype(
            jnp.bfloat16)
    w1f, w2f = fold_w(w1), fold_w(w2)
    b1f = b1.reshape(C, 1).astype(jnp.float32)
    b2f = b2.reshape(C, 1).astype(jnp.float32)

    lanes = block_h * W
    x_spec = pl.BlockSpec((1, C, lanes), lambda n, t: (n, 0, t))
    halo_spec = pl.BlockSpec((1, C, lanes),
                             lambda n, t: (n, 0, jnp.maximum(t, 1) - 1))
    w_spec = pl.BlockSpec((C, K * C), lambda n, t: (0, 0))
    b_spec = pl.BlockSpec((C, 1), lambda n, t: (0, 0))

    in_specs = [x_spec] + ([halo_spec] if n_h_tiles > 1 else []) \
        + [w_spec, b_spec, w_spec, b_spec]
    operands = [x_flat] + ([x_flat] if n_h_tiles > 1 else []) \
        + [w1f, b1f, w2f, b2f]

    kern = functools.partial(_temporal_block_kernel, K=K, dil=dilation,
                             pad=padding, W=W, block_h=block_h,
                             n_h_tiles=n_h_tiles)
    out_flat = pl.pallas_call(
        kern,
        out_shape=jax.ShapeDtypeStruct((N, C, hw), jnp.float32),
        grid_spec=pltpu.PrefetchScalarGridSpec(
            num_scalar_prefetch=0,
            grid=(N, n_h_tiles),
            in_specs=in_specs,
            out_specs=pl.BlockSpec((1, C, lanes), lambda n, t: (n, 0, t)),
        ),
        compiler_params=pltpu.CompilerParams(
            dimension_semantics=("parallel", "parallel"),
            # Conservative explicit cap: fits every listed generation (v7x has
            # only 64 MiB physical VMEM); the toy working set is KB-scale.
            vmem_limit_bytes=48 * 1024 * 1024,
        ),
    )(*operands)
    return out_flat.reshape(N, C, H, W)


# ----------------------------- references ------------------------------------
def _conv_chomp_relu_ref(x, w, b, dilation, padding, compute_dtype):
    out = jax.lax.conv_general_dilated(
        x.astype(compute_dtype), w.astype(compute_dtype),
        window_strides=(1, 1),
        padding=[(padding, padding), (padding, padding)],
        rhs_dilation=(dilation, dilation),
        dimension_numbers=("NCHW", "OIHW", "NCHW"),
        preferred_element_type=jnp.float32)
    out = out + b[None, :, None, None]
    if padding:
        out = out[:, :, :-padding, :-2 * padding]
    return jnp.maximum(out, 0.0)


def _reference(x, w1, b1, w2, b2, dilation, padding, compute_dtype=jnp.float32):
    """Pure-JAX replica of the PyTorch forward (eval mode)."""
    o1 = _conv_chomp_relu_ref(x, w1, b1, dilation, padding, compute_dtype)
    o2 = _conv_chomp_relu_ref(o1, w2, b2, dilation, padding, compute_dtype)
    return jnp.maximum(o2 + x, 0.0)


if __name__ == "__main__":
    key = jax.random.PRNGKey(0)
    N, C, H, W = 2, 8, 16, 16          # n_inputs == n_outputs == C (raw residual)
    K, dilation = 3, 1
    padding = dilation * (K - 1)

    k1, k2, k3, k4, k5 = jax.random.split(key, 5)
    # xavier_normal_(gain=0.02): std = gain * sqrt(2 / (fan_in + fan_out))
    std = 0.02 * (2.0 / (C * K + C * K)) ** 0.5
    w1 = std * jax.random.normal(k1, (C, C, K, 1), jnp.float32)
    w2 = std * jax.random.normal(k2, (C, C, K, 1), jnp.float32)
    bound = 1.0 / (C * K) ** 0.5       # torch Conv2d default bias init range
    b1 = jax.random.uniform(k3, (C,), jnp.float32, -bound, bound)
    b2 = jax.random.uniform(k4, (C,), jnp.float32, -bound, bound)
    x = jax.random.normal(k5, (N, C, H, W), jnp.float32)

    out = temporal_block_2d(x, w1, b1, w2, b2, kernel_size=K,
                            dilation=dilation, padding=padding)
    out = jax.block_until_ready(out)
    assert out.shape == (N, C, H, W)

    # Tight check against a reference that mirrors the kernel's bf16 MXU
    # operands (f32 accumulation), i.e. the standard TPU matmul precision.
    ref_bf16 = _reference(x, w1, b1, w2, b2, dilation, padding, jnp.bfloat16)
    err_bf16 = float(jnp.max(jnp.abs(out - ref_bf16)))
    assert err_bf16 < 1e-3, f"bf16-matched reference mismatch: {err_bf16}"

    # Loose sanity check against the pure-f32 PyTorch-equivalent forward.
    ref_f32 = _reference(x, w1, b1, w2, b2, dilation, padding, jnp.float32)
    err_f32 = float(jnp.max(jnp.abs(out - ref_f32)))
    assert err_f32 < 2e-2, f"f32 reference mismatch: {err_f32}"

    print("KERNEL_OK")
</pallas_src>

<mosaic_0001>
module attributes {stable_mosaic.version = 11 : i64} {
  func.func @_temporal_block_kernel(%arg0: i32, %arg1: i32, %arg2: memref<1x8x128xf32, #tpu.memory_space<vmem>>, %arg3: memref<1x8x128xf32, #tpu.memory_space<vmem>>, %arg4: memref<8x24xbf16, #tpu.memory_space<vmem>>, %arg5: memref<8x1xf32, #tpu.memory_space<vmem>>, %arg6: memref<8x24xbf16, #tpu.memory_space<vmem>>, %arg7: memref<8x1xf32, #tpu.memory_space<vmem>>, %arg8: memref<1x8x128xf32, #tpu.memory_space<vmem>>) attributes {dimension_semantics = [#tpu.dimension_semantics<parallel>, #tpu.dimension_semantics<parallel>], iteration_bounds = array<i64: 2, 2>, scalar_prefetch = 0 : i64, scratch_operands = 0 : i64, tpu.core_type = #tpu.core_type<tc>, window_params = [{transform_indices = @transform_0, window_bounds = array<i64: 1, 8, 128>}, {transform_indices = @transform_1, window_bounds = array<i64: 1, 8, 128>}, {pipeline_mode = #tpu.pipeline_mode<synchronous>, transform_indices = @transform_2, window_bounds = array<i64: 8, 24>}, {pipeline_mode = #tpu.pipeline_mode<synchronous>, transform_indices = @transform_3, window_bounds = array<i64: 8, 1>}, {pipeline_mode = #tpu.pipeline_mode<synchronous>, transform_indices = @transform_4, window_bounds = array<i64: 8, 24>}, {pipeline_mode = #tpu.pipeline_mode<synchronous>, transform_indices = @transform_5, window_bounds = array<i64: 8, 1>}, {transform_indices = @transform_6, window_bounds = array<i64: 1, 8, 128>}]} {
    %c0 = arith.constant 0 : index
    %c0_0 = arith.constant 0 : index
    %c0_1 = arith.constant 0 : index
    %0 = vector.load %arg2[%c0, %c0_0, %c0_1] : memref<1x8x128xf32, #tpu.memory_space<vmem>>, vector<1x8x128xf32>
    %1 = vector.shape_cast %0 : vector<1x8x128xf32> to vector<8x128xf32>
    %c0_2 = arith.constant 0 : index
    %c0_3 = arith.constant 0 : index
    %c64 = arith.constant 64 : index
    %2 = vector.load %arg3[%c0_2, %c0_3, %c64] : memref<1x8x128xf32, #tpu.memory_space<vmem>>, vector<1x8x64xf32>
    %3 = vector.shape_cast %2 : vector<1x8x64xf32> to vector<8x64xf32>
    %c0_i32 = arith.constant 0 : i32
    %4 = arith.cmpi ne, %arg1, %c0_i32 : i32
    %cst = arith.constant 0.000000e+00 : f32
    %5 = vector.broadcast %cst : f32 to vector<8x64xf32>
    %6 = arith.select %4, %3, %5 : vector<8x64xf32>
    %7 = tpu.concatenate %6, %1 in 1 : vector<8x64xf32>, vector<8x128xf32> -> vector<8x192xf32>
    %cst_4 = arith.constant 0.000000e+00 : f32
    %8 = vector.broadcast %cst_4 : f32 to vector<8x2xf32>
    %9 = vector.extract_strided_slice %7 {offsets = [0, 0], sizes = [8, 190], strides = [1, 1]} : vector<8x192xf32> to vector<8x190xf32>
    %10 = tpu.concatenate %8, %9 in 1 : vector<8x2xf32>, vector<8x190xf32> -> vector<8x192xf32>
    %11 = tpu.iota {dimensions = array<i32: 1>} : vector<1x192xi32>
    %c16_i32 = arith.constant 16 : i32
    %c0_i32_5 = arith.constant 0 : i32
    %12 = arith.cmpi eq, %c16_i32, %c0_i32_5 : i32
    %c1_i32 = arith.constant 1 : i32
    %13 = arith.select %12, %c1_i32, %c16_i32 : i32
    %14 = vector.broadcast %13 : i32 to vector<1x192xi32>
    %15 = arith.remsi %11, %14 : vector<1x192xi32>
    %c0_i32_6 = arith.constant 0 : i32
    %16 = vector.broadcast %c0_i32_6 : i32 to vector<1x192xi32>
    %17 = arith.cmpi ne, %15, %16 : vector<1x192xi32>
    %c0_i32_7 = arith.constant 0 : i32
    %18 = vector.broadcast %c0_i32_7 : i32 to vector<1x192xi32>
    %19 = arith.cmpi slt, %15, %18 : vector<1x192xi32>
    %c0_i32_8 = arith.constant 0 : i32
    %20 = arith.cmpi slt, %13, %c0_i32_8 : i32
    %21 = vector.broadcast %20 : i1 to vector<1x192xi1>
    %22 = vector.broadcast %21 : vector<1x192xi1> to vector<1x192xi1>
    %23 = arith.xori %19, %22 : vector<1x192xi1>
    %24 = arith.andi %23, %17 : vector<1x192xi1>
    %25 = vector.broadcast %13 : i32 to vector<1x192xi32>
    %26 = arith.addi %15, %25 : vector<1x192xi32>
    %27 = arith.select %24, %26, %15 : vector<1x192xi1>, vector<1x192xi32>
    %c2_i32 = arith.constant 2 : i32
    %28 = vector.broadcast %c2_i32 : i32 to vector<1x192xi32>
    %29 = arith.cmpi sge, %27, %28 : vector<1x192xi32>
    %cst_9 = arith.constant 0.000000e+00 : f32
    %30 = vector.shape_cast %29 : vector<1x192xi1> to vector<1x192xi1>
    %31 = vector.broadcast %30 : vector<1x192xi1> to vector<8x192xi1>
    %32 = vector.broadcast %cst_9 : f32 to vector<8x192xf32>
    %33 = arith.select %31, %10, %32 : vector<8x192xi1>, vector<8x192xf32>
    %34 = arith.truncf %33 : vector<8x192xf32> to vector<8x192xbf16>
    %35 = vector.extract_strided_slice %34 {offsets = [0, 0], sizes = [8, 160], strides = [1, 1]} : vector<8x192xbf16> to vector<8x160xbf16>
    %36 = vector.extract_strided_slice %34 {offsets = [0, 16], sizes = [8, 160], strides = [1, 1]} : vector<8x192xbf16> to vector<8x160xbf16>
    %37 = vector.extract_strided_slice %34 {offsets = [0, 32], sizes = [8, 160], strides = [1, 1]} : vector<8x192xbf16> to vector<8x160xbf16>
    %38 = tpu.concatenate %35, %36, %37 in 0 : vector<8x160xbf16>, vector<8x160xbf16>, vector<8x160xbf16> -> vector<24x160xbf16>
    %c0_10 = arith.constant 0 : index
    %c0_11 = arith.constant 0 : index
    %39 = vector.load %arg4[%c0_10, %c0_11] : memref<8x24xbf16, #tpu.memory_space<vmem>>, vector<8x24xbf16>
    %cst_12 = arith.constant dense<0.000000e+00> : vector<8x160xf32>
    %40 = tpu.matmul %39, %38, %cst_12 {dimension_numbers = #tpu.dot_dimension_numbers<[1], [0], [0], [1], [0, 0, 1, 1], [], []>} : vector<8x24xbf16>, vector<24x160xbf16>, vector<8x160xf32> -> vector<8x160xf32>
    %c0_13 = arith.constant 0 : index
    %c0_14 = arith.constant 0 : index
    %41 = vector.load %arg5[%c0_13, %c0_14] : memref<8x1xf32, #tpu.memory_space<vmem>>, vector<8x1xf32>
    %42 = vector.broadcast %41 : vector<8x1xf32> to vector<8x160xf32>
    %43 = arith.addf %40, %42 : vector<8x160xf32>
    %cst_15 = arith.constant 0.000000e+00 : f32
    %44 = vector.broadcast %cst_15 : f32 to vector<8x160xf32>
    %45 = arith.maximumf %43, %44 : vector<8x160xf32>
    %46 = tpu.iota {dimensions = array<i32: 1>} : vector<1x160xi32>
    %c0_i32_16 = arith.constant 0 : i32
    %47 = arith.cmpi ne, %arg1, %c0_i32_16 : i32
    %c32_i32 = arith.constant 32 : i32
    %48 = vector.broadcast %c32_i32 : i32 to vector<1x160xi32>
    %49 = arith.cmpi sge, %46, %48 : vector<1x160xi32>
    %50 = vector.broadcast %47 : i1 to vector<1x160xi1>
    %51 = arith.ori %50, %49 : vector<1x160xi1>
    %cst_17 = arith.constant 0.000000e+00 : f32
    %52 = vector.shape_cast %51 : vector<1x160xi1> to vector<1x160xi1>
    %53 = vector.broadcast %52 : vector<1x160xi1> to vector<8x160xi1>
    %54 = vector.broadcast %cst_17 : f32 to vector<8x160xf32>
    %55 = arith.select %53, %45, %54 : vector<8x160xi1>, vector<8x160xf32>
    %cst_18 = arith.constant 0.000000e+00 : f32
    %56 = vector.broadcast %cst_18 : f32 to vector<8x2xf32>
    %57 = vector.extract_strided_slice %55 {offsets = [0, 0], sizes = [8, 158], strides = [1, 1]} : vector<8x160xf32> to vector<8x158xf32>
    %58 = tpu.concatenate %56, %57 in 1 : vector<8x2xf32>, vector<8x158xf32> -> vector<8x160xf32>
    %59 = tpu.iota {dimensions = array<i32: 1>} : vector<1x160xi32>
    %c16_i32_19 = arith.constant 16 : i32
    %c0_i32_20 = arith.constant 0 : i32
    %60 = arith.cmpi eq, %c16_i32_19, %c0_i32_20 : i32
    %c1_i32_21 = arith.constant 1 : i32
    %61 = arith.select %60, %c1_i32_21, %c16_i32_19 : i32
    %62 = vector.broadcast %61 : i32 to vector<1x160xi32>
    %63 = arith.remsi %59, %62 : vector<1x160xi32>
    %c0_i32_22 = arith.constant 0 : i32
    %64 = vector.broadcast %c0_i32_22 : i32 to vector<1x160xi32>
    %65 = arith.cmpi ne, %63, %64 : vector<1x160xi32>
    %c0_i32_23 = arith.constant 0 : i32
    %66 = vector.broadcast %c0_i32_23 : i32 to vector<1x160xi32>
    %67 = arith.cmpi slt, %63, %66 : vector<1x160xi32>
    %c0_i32_24 = arith.constant 0 : i32
    %68 = arith.cmpi slt, %61, %c0_i32_24 : i32
    %69 = vector.broadcast %68 : i1 to vector<1x160xi1>
    %70 = vector.broadcast %69 : vector<1x160xi1> to vector<1x160xi1>
    %71 = arith.xori %67, %70 : vector<1x160xi1>
    %72 = arith.andi %71, %65 : vector<1x160xi1>
    %73 = vector.broadcast %61 : i32 to vector<1x160xi32>
    %74 = arith.addi %63, %73 : vector<1x160xi32>
    %75 = arith.select %72, %74, %63 : vector<1x160xi1>, vector<1x160xi32>
    %c2_i32_25 = arith.constant 2 : i32
    %76 = vector.broadcast %c2_i32_25 : i32 to vector<1x160xi32>
    %77 = arith.cmpi sge, %75, %76 : vector<1x160xi32>
    %cst_26 = arith.constant 0.000000e+00 : f32
    %78 = vector.shape_cast %77 : vector<1x160xi1> to vector<1x160xi1>
    %79 = vector.broadcast %78 : vector<1x160xi1> to vector<8x160xi1>
    %80 = vector.broadcast %cst_26 : f32 to vector<8x160xf32>
    %81 = arith.select %79, %58, %80 : vector<8x160xi1>, vector<8x160xf32>
    %82 = arith.truncf %81 : vector<8x160xf32> to vector<8x160xbf16>
    %83 = vector.extract_strided_slice %82 {offsets = [0, 0], sizes = [8, 128], strides = [1, 1]} : vector<8x160xbf16> to vector<8x128xbf16>
    %84 = vector.extract_strided_slice %82 {offsets = [0, 16], sizes = [8, 128], strides = [1, 1]} : vector<8x160xbf16> to vector<8x128xbf16>
    %85 = vector.extract_strided_slice %82 {offsets = [0, 32], sizes = [8, 128], strides = [1, 1]} : vector<8x160xbf16> to vector<8x128xbf16>
    %86 = tpu.concatenate %83, %84, %85 in 0 : vector<8x128xbf16>, vector<8x128xbf16>, vector<8x128xbf16> -> vector<24x128xbf16>
    %c0_27 = arith.constant 0 : index
    %c0_28 = arith.constant 0 : index
    %87 = vector.load %arg6[%c0_27, %c0_28] : memref<8x24xbf16, #tpu.memory_space<vmem>>, vector<8x24xbf16>
    %cst_29 = arith.constant dense<0.000000e+00> : vector<8x128xf32>
    %88 = tpu.matmul %87, %86, %cst_29 {dimension_numbers = #tpu.dot_dimension_numbers<[1], [0], [0], [1], [0, 0, 1, 1], [], []>} : vector<8x24xbf16>, vector<24x128xbf16>, vector<8x128xf32> -> vector<8x128xf32>
    %c0_30 = arith.constant 0 : index
    %c0_31 = arith.constant 0 : index
    %89 = vector.load %arg7[%c0_30, %c0_31] : memref<8x1xf32, #tpu.memory_space<vmem>>, vector<8x1xf32>
    %90 = vector.broadcast %89 : vector<8x1xf32> to vector<8x128xf32>
    %91 = arith.addf %88, %90 : vector<8x128xf32>
    %cst_32 = arith.constant 0.000000e+00 : f32
    %92 = vector.broadcast %cst_32 : f32 to vector<8x128xf32>
    %93 = arith.maximumf %91, %92 : vector<8x128xf32>
    %94 = arith.addf %93, %1 : vector<8x128xf32>
    %cst_33 = arith.constant 0.000000e+00 : f32
    %95 = vector.broadcast %cst_33 : f32 to vector<8x128xf32>
    %96 = arith.maximumf %94, %95 : vector<8x128xf32>
    %c0_34 = arith.constant 0 : index
    %c0_35 = arith.constant 0 : index
    %c0_36 = arith.constant 0 : index
    %97 = vector.load %arg8[%c0_34, %c0_35, %c0_36] : memref<1x8x128xf32, #tpu.memory_space<vmem>>, vector<1x8x128xf32>
    %98 = vector.shape_cast %97 : vector<1x8x128xf32> to vector<8x128xf32>
    %99 = vector.shape_cast %96 : vector<8x128xf32> to vector<1x8x128xf32>
    tpu.vector_store %arg8[%c0_34, %c0_35, %c0_36], %99 {strides = array<i32>} : memref<1x8x128xf32, #tpu.memory_space<vmem>>, vector<1x8x128xf32>,
    return
  }
  func.func @transform_0(%arg0: i32, %arg1: i32) -> (i32, i32, i32) {
    %c0_i32 = arith.constant 0 : i32
    %c0_i32_0 = arith.constant 0 : i32
    return %arg0, %c0_i32, %arg1 : i32, i32, i32
  }
  func.func @transform_1(%arg0: i32, %arg1: i32) -> (i32, i32, i32) {
    %c1_i32 = arith.constant 1 : i32
    %0 = arith.maxsi %arg1, %c1_i32 : i32
    %c1_i32_0 = arith.constant 1 : i32
    %1 = arith.subi %0, %c1_i32_0 : i32
    %c0_i32 = arith.constant 0 : i32
    %c0_i32_1 = arith.constant 0 : i32
    return %arg0, %c0_i32, %1 : i32, i32, i32
  }
  func.func @transform_2(%arg0: i32, %arg1: i32) -> (i32, i32) {
    %c0_i32 = arith.constant 0 : i32
    %c0_i32_0 = arith.constant 0 : i32
    %c0_i32_1 = arith.constant 0 : i32
    return %c0_i32, %c0_i32_0 : i32, i32
  }
  func.func @transform_3(%arg0: i32, %arg1: i32) -> (i32, i32) {
    %c0_i32 = arith.constant 0 : i32
    %c0_i32_0 = arith.constant 0 : i32
    %c0_i32_1 = arith.constant 0 : i32
    return %c0_i32, %c0_i32_0 : i32, i32
  }
  func.func @transform_4(%arg0: i32, %arg1: i32) -> (i32, i32) {
    %c0_i32 = arith.constant 0 : i32
    %c0_i32_0 = arith.constant 0 : i32
    %c0_i32_1 = arith.constant 0 : i32
    return %c0_i32, %c0_i32_0 : i32, i32
  }
  func.func @transform_5(%arg0: i32, %arg1: i32) -> (i32, i32) {
    %c0_i32 = arith.constant 0 : i32
    %c0_i32_0 = arith.constant 0 : i32
    %c0_i32_1 = arith.constant 0 : i32
    return %c0_i32, %c0_i32_0 : i32, i32
  }
  func.func @transform_6(%arg0: i32, %arg1: i32) -> (i32, i32, i32) {
    %c0_i32 = arith.constant 0 : i32
    %c0_i32_0 = arith.constant 0 : i32
    return %arg0, %c0_i32, %arg1 : i32, i32, i32
  }
}

</mosaic_0001>

<llo_original>
// kernel: tpu_custom_call.1
$region0: #{tpu_custom_call.1}
  #allocation0 [shape = 'u32[]', space=smem, size = 0x4, offset = 0x4, fixed_abs, tag = 'smem constant byte address 0x4 - core index']
  #allocation1 [shape = 'u32[144,128]{1,0:T(1,128)}', space=vmem, size = 0x12000, scoped, tag = 'internal scratch']
  %s0 = inlined_call_operand.hbm [shape: f32[2,8,256], index: 0, kind: input, shape index: {}]
  %s1 = inlined_call_operand.hbm [shape: f32[2,8,256], index: 1, kind: input, shape index: {}]
  %s2 = inlined_call_operand.vmem [shape: bf16[8,24], index: 2, kind: input, shape index: {}]
  %s3 = inlined_call_operand.vmem [shape: f32[8,1], index: 3, kind: input, shape index: {}]
  %s4 = inlined_call_operand.vmem [shape: bf16[8,24], index: 4, kind: input, shape index: {}]
  %s5 = inlined_call_operand.vmem [shape: f32[8,1], index: 5, kind: input, shape index: {}]
  %s6 = inlined_call_operand.hbm [shape: f32[2,8,256], index: 6, kind: output, shape index: {}]
  %s7 = sld [smem:[#allocation0]]
  $region65: #{tpu_custom_call.1} parent=0
    _
  %s9 = ssub.s32 1, %s7
  %s10 = scalar_select 0, %s9, %s7
  $region1: #{tpu_custom_call.1} parent=0
    #allocation2 [shape = 'u8[8192]{0}', space=vmem, size = 0x2000, scoped, tag = 'input window, operand 0']
    #allocation3 [shape = 's32[2]{0}', space=sflag, size = 0x8, scoped, tag = 'scoped memory for tpu_custom_call.1']
    #allocation4 [shape = 's32[2]{0}', space=sflag, size = 0x8, scoped, tag = 'scoped memory for tpu_custom_call.1']
    #allocation5 [shape = 'u8[8192]{0}', space=vmem, size = 0x2000, scoped, tag = 'input window, operand 1']
    #allocation6 [shape = 's32[2]{0}', space=sflag, size = 0x8, scoped, tag = 'scoped memory for tpu_custom_call.1']
    #allocation7 [shape = 'u8[8192]{0}', space=vmem, size = 0x2000, scoped, tag = 'output window, operand 0']
    %11 = vsyncpa [#allocation3], 0
    %s12 = scalar_lea.sflag [#allocation3], 1
    %13 = vsyncpa %s12, 0
    %14 = vsyncpa [#allocation6], 0
    %s15 = scalar_lea.sflag [#allocation6], 1
    %16 = vsyncpa %s15, 0
    %17 = vsyncpa [#allocation4], 0
    %s18 = scalar_lea.sflag [#allocation4], 1
    %19 = vsyncpa %s18, 0
    loop: start=0, step=1, limit=6
    $region2: #{tpu_custom_call.1} parent=1 // loop_pre_header
      _
    $region3: #{tpu_custom_call.1} parent=1 // loop_header
      %s21 = sphi 0, %s25
      %p22 = scmp.ge.s32.totalorder %s21, 6
      %s28 = sphi 0, %s40
      %s29 = sphi 0, %s36
      %s30 = sphi 0, %s28
      %s31 = sphi 0, %s29
      %s32 = sphi 0, %s30
      %s33 = sphi 0, %s31
      %s45 = sphi 0, %s47
      %s48 = sphi 0, %s45
      %s49 = sphi 0, %s48
      %s65 = sphi 0, %s49
      %s79 = sphi 0, %s81
      %s82 = sphi 0, %s79
      %s83 = sphi 0, %s82
      %s99 = sphi 0, %s83
      %s103 = sphi 0, %s103
      %s105 = sphi 0, %s103
      %s106 = sphi 0, %s105
      %s120 = sphi 0, %s106
      %s124 = sphi 0, %s124
      %s126 = sphi 0, %s124
      %s127 = sphi 0, %s126
      %s141 = sphi 0, %s127
      %s145 = sphi 0, %s145
      %s147 = sphi 0, %s145
      %s148 = sphi 0, %s147
      %s162 = sphi 0, %s148
      %s166 = sphi 0, %s166
      %s168 = sphi 0, %s166
      %s169 = sphi 0, %s168
      %s183 = sphi 0, %s169
      %s191 = sphi 0, %s193
      %s194 = sphi 0, %s191
      %s195 = sphi 0, %s194
      %s211 = sphi 0, %s195
    $region4: #{tpu_custom_call.1} parent=1 // loop_header_branch
      %24 = sbr.rel (%p22) target = $region8
    $region5: #{tpu_custom_call.1} parent=1 // loop_body
      %s26 = ssub.s32 %s21, 1
      %s27 = ssub.s32 %s21, 2
      %s34 = sadd.s32 1, %s29
      %p35 = scmp.ge.s32.totalorder %s34, 2
      %s36 = scalar_select %p35, 0, %s34
      %s37 = sadd.s32 1, %s28
      %s38 = scalar_select %p35, %s37, %s28
      %p39 = scmp.ge.s32.totalorder %s38, 2
      %s40 = scalar_select %p39, 0, %s38
      %s41 = ssub.s32 %s28, %s40
      %s42 = ssub.s32 %s29, %s36
      %s43 = sor.u32 %s41, %s42
      %p44 = scmp.eq.s32.totalorder %s43, 0
      %s46 = sadd.s32 %s45, 1
      %s47 = scalar_select %p44, %s45, %s46
      %p50 = pneg %p44
      %p51 = scmp.eq.s32.totalorder %s21, 3
      %p52 = por %p50, %p51
      %p53 = scmp.ne.s32.totalorder %s45, %s48
      %p54 = scmp.eq.s32.totalorder %s21, 0
      %p55 = por %p53, %p54
      %p56 = scmp.ne.s32.totalorder %s45, %s48
      %p57 = scmp.eq.s32.totalorder %s26, 3
      %p58 = por %p56, %p57
      %p59 = scmp.ne.s32.totalorder %s48, %s49
      %p60 = scmp.eq.s32.totalorder %s26, 0
      %p61 = por %p59, %p60
      %p62 = scmp.ne.s32.totalorder %s48, %s49
      %p63 = scmp.eq.s32.totalorder %s27, 3
      %p64 = por %p62, %p63
      %p66 = scmp.ne.s32.totalorder %s49, %s65
      %p67 = scmp.eq.s32.totalorder %s27, 0
      %p68 = por %p66, %p67
      %p69 = scmp.gt.s32.totalorder %s29, 1
      %s70 = scalar_select %p69, %s29, 1
      %s71 = ssub.s32 %s70, 1
      %p72 = scmp.gt.s32.totalorder %s36, 1
      %s73 = scalar_select %p72, %s36, 1
      %s74 = ssub.s32 %s73, 1
      %s75 = ssub.s32 %s28, %s40
      %s76 = ssub.s32 %s71, %s74
      %s77 = sor.u32 %s75, %s76
      %p78 = scmp.eq.s32.totalorder %s77, 0
      %s80 = sadd.s32 %s79, 1
      %s81 = scalar_select %p78, %s79, %s80
      %p84 = pneg %p78
      %p85 = scmp.eq.s32.totalorder %s21, 3
      %p86 = por %p84, %p85
      %p87 = scmp.ne.s32.totalorder %s79, %s82
      %p88 = scmp.eq.s32.totalorder %s21, 0
      %p89 = por %p87, %p88
      %p90 = scmp.ne.s32.totalorder %s79, %s82
      %p91 = scmp.eq.s32.totalorder %s26, 3
      %p92 = por %p90, %p91
      %p93 = scmp.ne.s32.totalorder %s82, %s83
      %p94 = scmp.eq.s32.totalorder %s26, 0
      %p95 = por %p93, %p94
      %p96 = scmp.ne.s32.totalorder %s82, %s83
      %p97 = scmp.eq.s32.totalorder %s27, 3
      %p98 = por %p96, %p97
      %p100 = scmp.ne.s32.totalorder %s83, %s99
      %p101 = scmp.eq.s32.totalorder %s27, 0
      %p102 = por %p100, %p101
      %s104 = sadd.s32 %s103, 1
      %p107 = scmp.eq.s32.totalorder %s21, 3
      %p108 = scmp.ne.s32.totalorder %s103, %s105
      %p109 = scmp.eq.s32.totalorder %s21, 0
      %p110 = por %p108, %p109
      %p111 = scmp.ne.s32.totalorder %s103, %s105
      %p112 = scmp.eq.s32.totalorder %s26, 3
      %p113 = por %p111, %p112
      %p114 = scmp.ne.s32.totalorder %s105, %s106
      %p115 = scmp.eq.s32.totalorder %s26, 0
      %p116 = por %p114, %p115
      %p117 = scmp.ne.s32.totalorder %s105, %s106
      %p118 = scmp.eq.s32.totalorder %s27, 3
      %p119 = por %p117, %p118
      %p121 = scmp.ne.s32.totalorder %s106, %s120
      %p122 = scmp.eq.s32.totalorder %s27, 0
      %p123 = por %p121, %p122
      %s125 = sadd.s32 %s124, 1
      %p128 = scmp.eq.s32.totalorder %s21, 3
      %p129 = scmp.ne.s32.totalorder %s124, %s126
      %p130 = scmp.eq.s32.totalorder %s21, 0
      %p131 = por %p129, %p130
      %p132 = scmp.ne.s32.totalorder %s124, %s126
      %p133 = scmp.eq.s32.totalorder %s26, 3
      %p134 = por %p132, %p133
      %p135 = scmp.ne.s32.totalorder %s126, %s127
      %p136 = scmp.eq.s32.totalorder %s26, 0
      %p137 = por %p135, %p136
      %p138 = scmp.ne.s32.totalorder %s126, %s127
      %p139 = scmp.eq.s32.totalorder %s27, 3
      %p140 = por %p138, %p139
      %p142 = scmp.ne.s32.totalorder %s127, %s141
      %p143 = scmp.eq.s32.totalorder %s27, 0
      %p144 = por %p142, %p143
      %s146 = sadd.s32 %s145, 1
      %p149 = scmp.eq.s32.totalorder %s21, 3
      %p150 = scmp.ne.s32.totalorder %s145, %s147
      %p151 = scmp.eq.s32.totalorder %s21, 0
      %p152 = por %p150, %p151
      %p153 = scmp.ne.s32.totalorder %s145, %s147
      %p154 = scmp.eq.s32.totalorder %s26, 3
      %p155 = por %p153, %p154
      %p156 = scmp.ne.s32.totalorder %s147, %s148
      %p157 = scmp.eq.s32.totalorder %s26, 0
      %p158 = por %p156, %p157
      %p159 = scmp.ne.s32.totalorder %s147, %s148
      %p160 = scmp.eq.s32.totalorder %s27, 3
      %p161 = por %p159, %p160
      %p163 = scmp.ne.s32.totalorder %s148, %s162
      %p164 = scmp.eq.s32.totalorder %s27, 0
      %p165 = por %p163, %p164
      %s167 = sadd.s32 %s166, 1
      %p170 = scmp.eq.s32.totalorder %s21, 3
      %p171 = scmp.ne.s32.totalorder %s166, %s168
      %p172 = scmp.eq.s32.totalorder %s21, 0
      %p173 = por %p171, %p172
      %p174 = scmp.ne.s32.totalorder %s166, %s168
      %p175 = scmp.eq.s32.totalorder %s26, 3
      %p176 = por %p174, %p175
      %p177 = scmp.ne.s32.totalorder %s168, %s169
      %p178 = scmp.eq.s32.totalorder %s26, 0
      %p179 = por %p177, %p178
      %p180 = scmp.ne.s32.totalorder %s168, %s169
      %p181 = scmp.eq.s32.totalorder %s27, 3
      %p182 = por %p180, %p181
      %p184 = scmp.ne.s32.totalorder %s169, %s183
      %p185 = scmp.eq.s32.totalorder %s27, 0
      %p186 = por %p184, %p185
      %s187 = ssub.s32 %s28, %s40
      %s188 = ssub.s32 %s29, %s36
      %s189 = sor.u32 %s187, %s188
      %p190 = scmp.eq.s32.totalorder %s189, 0
      %s192 = sadd.s32 %s191, 1
      %s193 = scalar_select %p190, %s191, %s192
      %p196 = pneg %p190
      %p197 = scmp.eq.s32.totalorder %s21, 3
      %p198 = por %p196, %p197
      %p199 = scmp.ne.s32.totalorder %s191, %s194
      %p200 = scmp.eq.s32.totalorder %s21, 0
      %p201 = por %p199, %p200
      %p202 = scmp.ne.s32.totalorder %s191, %s194
      %p203 = scmp.eq.s32.totalorder %s26, 3
      %p204 = por %p202, %p203
      %p205 = scmp.ne.s32.totalorder %s194, %s195
      %p206 = scmp.eq.s32.totalorder %s26, 0
      %p207 = por %p205, %p206
      %p208 = scmp.ne.s32.totalorder %s194, %s195
      %p209 = scmp.eq.s32.totalorder %s27, 3
      %p210 = por %p208, %p209
      %p212 = scmp.ne.s32.totalorder %s195, %s211
      %p213 = scmp.eq.s32.totalorder %s27, 0
      %p214 = por %p212, %p213
      %p215 = scmp.le.s32.totalorder 1, %s21
      %p216 = scmp.lt.s32.totalorder %s21, 5
      %p217 = pnand %p215, %p216
      %p218 = pneg %p217
      // Predicated region
      $region9: #{tpu_custom_call.1} parent=5 // pred_check
        _
      $region10: #{tpu_custom_call.1} parent=5 // pred_check_branch
        %220 = sbr.rel (%p217) target = $region12
      $region11: #{tpu_custom_call.1} parent=5 // pred_region
        %s221 = ssub.s32 %s21, 1
        // Predicated region
        $region13: #{tpu_custom_call.1} parent=11 // pred_check
          %p222 = pneg %p116
        $region14: #{tpu_custom_call.1} parent=11 // pred_check_branch
          %224 = sbr.rel (%p222) target = $region16
        $region15: #{tpu_custom_call.1} parent=11 // pred_region
          _
        $region16: #{tpu_custom_call.1} parent=11 // pred_fallthru
          _
        // Predicated region
        $region17: #{tpu_custom_call.1} parent=11 // pred_check
          %p225 = pneg %p137
        $region18: #{tpu_custom_call.1} parent=11 // pred_check_branch
          %227 = sbr.rel (%p225) target = $region20
        $region19: #{tpu_custom_call.1} parent=11 // pred_region
          _
        $region20: #{tpu_custom_call.1} parent=11 // pred_fallthru
          _
        // Predicated region
        $region21: #{tpu_custom_call.1} parent=11 // pred_check
          %p228 = pneg %p158
        $region22: #{tpu_custom_call.1} parent=11 // pred_check_branch
          %230 = sbr.rel (%p228) target = $region24
        $region23: #{tpu_custom_call.1} parent=11 // pred_region
          _
        $region24: #{tpu_custom_call.1} parent=11 // pred_fallthru
          _
        // Predicated region
        $region25: #{tpu_custom_call.1} parent=11 // pred_check
          %p231 = pneg %p179
        $region26: #{tpu_custom_call.1} parent=11 // pred_check_branch
          %233 = sbr.rel (%p231) target = $region28
        $region27: #{tpu_custom_call.1} parent=11 // pred_region
          _
        $region28: #{tpu_custom_call.1} parent=11 // pred_fallthru
          _
      $region12: #{tpu_custom_call.1} parent=5 // pred_fallthru
        _
      %p234 = scmp.lt.s32.totalorder %s21, 4
      // Predicated region
      $region29: #{tpu_custom_call.1} parent=5 // pred_check
        %p235 = pneg %p234
      $region30: #{tpu_custom_call.1} parent=5 // pred_check_branch
        %237 = sbr.rel (%p235) target = $region32
      $region31: #{tpu_custom_call.1} parent=5 // pred_region
        // Predicated region
        $region33: #{tpu_custom_call.1} parent=31 // pred_check
          %p238 = pneg %p55
        $region34: #{tpu_custom_call.1} parent=31 // pred_check_branch
          %240 = sbr.rel (%p238) target = $region36
        $region35: #{tpu_custom_call.1} parent=31 // pred_region
          %s241 = sand.u32 %s45, 1
          %s242 = scalar_lea.sflag [#allocation3], %s241
          %s243 = sand.u32 %s45, 1
          %s244 = smul.addr %s243, 8
          %s245 = scalar_lea.vmem [#allocation2], %s244
          %s247 = ssub.s32 128, 128
          %248 = vsyncadd %s242, %s247
          %s249 = smul.addr %s28, 2
          %s250 = sadd.s32 %s29, %s249
          %s251 = smul.addr %s250, 128
          %s252 = scalar_lea.hbm %s0, %s251
          %s254 = sshll.u32 %s245, 4
          %s255 = int_to_ptr.vmem [resolvable:$true] %s254
          %257 = dma.hbm_to_vmem [thread:$0]  %s252, 128, %s255, %s242
        $region36: #{tpu_custom_call.1} parent=31 // pred_fallthru
          _
        // Predicated region
        $region37: #{tpu_custom_call.1} parent=31 // pred_check
          %p258 = pneg %p89
        $region38: #{tpu_custom_call.1} parent=31 // pred_check_branch
          %260 = sbr.rel (%p258) target = $region40
        $region39: #{tpu_custom_call.1} parent=31 // pred_region
          %s261 = sand.u32 %s79, 1
          %s262 = scalar_lea.sflag [#allocation6], %s261
          %s263 = sand.u32 %s79, 1
          %s264 = smul.addr %s263, 8
          %s265 = scalar_lea.vmem [#allocation5], %s264
          %p266 = scmp.gt.s32.totalorder %s29, 1
          %s267 = scalar_select %p266, %s29, 1
          %s268 = ssub.s32 %s267, 1
          %s270 = ssub.s32 128, 128
          %271 = vsyncadd %s262, %s270
          %s272 = smul.addr %s28, 2
          %s273 = sadd.s32 %s268, %s272
          %s274 = smul.addr %s273, 128
          %s275 = scalar_lea.hbm %s1, %s274
          %s277 = sshll.u32 %s265, 4
          %s278 = int_to_ptr.vmem [resolvable:$true] %s277
          %280 = dma.hbm_to_vmem [thread:$0]  %s275, 128, %s278, %s262
        $region40: #{tpu_custom_call.1} parent=31 // pred_fallthru
          _
      $region32: #{tpu_custom_call.1} parent=5 // pred_fallthru
        _
      %p281 = scmp.le.s32.totalorder 1, %s21
      %p282 = scmp.lt.s32.totalorder %s21, 5
      %p283 = pnand %p281, %p282
      %p284 = pneg %p283
      // Predicated region
      $region41: #{tpu_custom_call.1} parent=5 // pred_check
        _
      $region42: #{tpu_custom_call.1} parent=5 // pred_check_branch
        %286 = sbr.rel (%p283) target = $region44
      $region43: #{tpu_custom_call.1} parent=5 // pred_region
        %s287 = ssub.s32 %s21, 1
        %s288 = sand.u32 %s48, 1
        %s289 = scalar_lea.sflag [#allocation3], %s288
        %s290 = sand.u32 %s48, 1
        %s291 = smul.addr %s290, 8
        %s292 = scalar_lea.vmem [#allocation2], %s291
        // Predicated region
        $region45: #{tpu_custom_call.1} parent=43 // pred_check
          %p293 = pneg %p61
        $region46: #{tpu_custom_call.1} parent=43 // pred_check_branch
          %295 = sbr.rel (%p293) target = $region48
        $region47: #{tpu_custom_call.1} parent=43 // pred_region
          %296 = dma.done %s289, 128
        $region48: #{tpu_custom_call.1} parent=43 // pred_fallthru
          _
        %s297 = sand.u32 %s82, 1
        %s298 = scalar_lea.sflag [#allocation6], %s297
        %s299 = sand.u32 %s82, 1
        %s300 = smul.addr %s299, 8
        %s301 = scalar_lea.vmem [#allocation5], %s300
        // Predicated region
        $region49: #{tpu_custom_call.1} parent=43 // pred_check
          %p302 = pneg %p95
        $region50: #{tpu_custom_call.1} parent=43 // pred_check_branch
          %304 = sbr.rel (%p302) target = $region52
        $region51: #{tpu_custom_call.1} parent=43 // pred_region
          %305 = dma.done %s298, 128
        $region52: #{tpu_custom_call.1} parent=43 // pred_fallthru
          _
        %s306 = sand.u32 %s48, 1
        %s307 = scalar_lea.sflag [#allocation3], %s306
        %s308 = sand.u32 %s48, 1
        %s309 = smul.addr %s308, 8
        %s310 = scalar_lea.vmem [#allocation2], %s309
        %p311 = pneg %p61
        %p312 = pneg %p58
        %s313 = sand.u32 %s82, 1
        %s314 = scalar_lea.sflag [#allocation6], %s313
        %s315 = sand.u32 %s82, 1
        %s316 = smul.addr %s315, 8
        %s317 = scalar_lea.vmem [#allocation5], %s316
        %p318 = pneg %p95
        %p319 = pneg %p92
        %p320 = pneg %p116
        %p321 = pneg %p113
        %p322 = pneg %p137
        %p323 = pneg %p134
        %p324 = pneg %p158
        %p325 = pneg %p155
        %p326 = pneg %p179
        %p327 = pneg %p176
        %p328 = pneg %p207
        %p329 = pneg %p204
        %s330 = sand.u32 %s194, 1
        %s331 = scalar_lea.sflag [#allocation4], %s330
        %s332 = sand.u32 %s194, 1
        %s333 = smul.addr %s332, 8
        %s334 = scalar_lea.vmem [#allocation7], %s333
        %p335 = scmp.gt.s32.totalorder %s31, 1
        %s336 = scalar_select %p335, %s31, 1
        %s337 = ssub.s32 %s336, 1
        %v339 = vld [vmem:[%s292] sm:$0xff]
        %v340 = vld [vmem:[%s301] sm:$0xff]
        %p341 = scmp.ne.s32.totalorder %s31, 0
        %s342 = scalar_select %p341, 1, 0
        %v343 = vstv %s342
        %vm344 = vcmp.eq.s32.totalorder %v343, 1
        %v345 = vsel %vm344, %v340, 0.0
        %347 = vrot.lane.b32.xlu0 %v345, 64
        %v348 = vpop.permute.xlu0 %347
        %351 = vrot.lane.b32.xlu0 %v339, 64
        %v352 = vpop.permute.xlu0 %351
        %vm354 = vcmask 523264
        %v355 = vsel %vm354, %v348, %v352
        %357 = vrot.lane.b32.xlu0 %v355, 2
        %v358 = vpop.permute.xlu0 %357
        %359 = vrot.lane.b32.xlu0 %v352, 2
        %v360 = vpop.permute.xlu0 %359
        %vm361 = vcmask 15360
        %v362 = vsel %vm361, %v358, %v360
        %v365 = vsel %vm361, 0.0, %v358
        %v366 = vlaneseq
        %v367 = vand.u32 %v366, 127
        %v368 = vadd.s32 %v367, 128
        %vm369 = vcmp.lt.s32.totalorder %v367, 0
        %v370 = vsub.s32 0, %v367
        %v371 = vsel %vm369, %v370, %v367
        %v372 = vshrl.u32 %v371, 4
        %v373 = vand.u32 %v371, 15
        %v374 = vsub.s32 0, %v373
        %v375 = vsel %vm369, %v374, %v373
        %vm376 = vcmp.lt.s32.totalorder %v368, 0
        %v377 = vsub.s32 0, %v368
        %v378 = vsel %vm376, %v377, %v368
        %v379 = vshrl.u32 %v378, 4
        %v380 = vand.u32 %v378, 15
        %v381 = vsub.s32 0, %v380
        %v382 = vsel %vm376, %v381, %v380
        %vm383 = vcmp.ne.s32.totalorder %v375, 0
        %vm384 = vcmp.ne.s32.totalorder %v382, 0
        %vm385 = vcmp.lt.s32.totalorder %v375, 0
        %vm386 = vcmp.lt.s32.totalorder %v382, 0
        %vm387 = vmand %vm385, %vm383
        %vm388 = vmand %vm386, %vm384
        %v389 = vadd.s32 %v375, 16
        %v390 = vadd.s32 %v382, 16
        %v391 = vsel %vm387, %v389, %v375
        %v392 = vsel %vm388, %v390, %v382
        %vm393 = vcmp.ge.s32.totalorder %v391, 2
        %vm394 = vcmp.ge.s32.totalorder %v392, 2
        %v395 = vsel %vm393, 1, 0
        %v396 = vsel %vm394, 1, 0
        %vm397 = vcmp.eq.s32.totalorder %v395, 1
        %vm398 = vcmp.eq.s32.totalorder %v396, 1
        %v399 = vsel %vm397, %v365, 0.0
        %v400 = vsel %vm398, %v362, 0.0
        %v401 = vpack.c.bf16 %v399, %v399
        %v402 = vpack.c.bf16 %v400, %v400
        %v405 = vrot.slane %v401, 4
        %v406 = vrot.slane %v402, 4
        %407 = vrot.lane.b32.xlu0 %v405, 112
        %v408 = vpop.permute.xlu0 %407
        %409 = vrot.lane.b32.xlu0 %v406, 112
        %v410 = vpop.permute.xlu0 %409
        %vm411 = vcmask 916480
        %v412 = vsel %vm411, %v408, %v410
        %413 = vrot.lane.b32.xlu0 %v401, 96
        %v414 = vpop.permute.xlu0 %413
        %415 = vrot.lane.b32.xlu0 %v402, 96
        %v416 = vpop.permute.xlu0 %415
        %vm417 = vcmask 785408
        %v418 = vsel %vm417, %v414, %v416
        %vm419 = vcmask 1043456
        %v422 = vsel %vm419, %v401, %v412
        %v426 = vsel %vm419, %v402, %v410
        %v428 = vld [vmem:[%s2] sm:$0xf]
        %v429 = vld [vmem:[%s3] sm:$0xff]
        %431 = vset.pattern.permute.xlu0 0
        %432 = vperm.xlu0 %431, %v429
        %v433 = vpop.permute.xlu0 %432
        %vm435 = vcmask 195584
        %v437 = vsel %vm435, %v428, 0
        %v440 = vsel %vm419, %v418, 0
        %v443 = vsel %vm419, %v416, 0
        %445 = vmatprep.subr.bf16.mxu0 %v426
        %446 = vmatpush1.bf16.msra.mxu0 %v422
        %447 = vmatprep.subr.bf16.mxu0 %v443
        %448 = vmatpush1.bf16.msra.mxu0 %v440
        %449 = vmatprep.subr.bf16.mxu0 0
        %450 = vmatpush1.bf16.msra.mxu0 0
        %451 = vmatprep.subr.bf16.mxu0 0
        %452 = vmatpush1.bf16.msra.mxu0 0
        %453 = vmatprep.subr.bf16.mxu0 0
        %454 = vmatpush1.bf16.msra.mxu0 0
        %455 = vmatprep.subr.bf16.mxu0 0
        %456 = vmatpush1.bf16.msra.mxu0 0
        %457 = vmatprep.subr.bf16.mxu0 0
        %458 = vmatpush1.bf16.msra.mxu0 0
        %459 = vmatprep.subr.bf16.mxu0 0
        %460 = vmatpush1.bf16.msra.mxu0 0
        %461 = vmatprep.subr.bf16.mxu0 0
        %462 = vmatpush1.bf16.msra.mxu0 0
        %463 = vmatprep.subr.bf16.mxu0 0
        %464 = vmatpush1.bf16.msra.mxu0 0
        %465 = vmatprep.subr.bf16.mxu0 0
        %466 = vmatpush1.bf16.msra.mxu0 0
        %467 = vmatprep.subr.bf16.mxu0 0
        %468 = vmatpush1.bf16.msra.mxu0 0
        %469 = vmatprep.subr.bf16.mxu0 0
        %470 = vmatpush1.bf16.msra.mxu0 0
        %471 = vmatprep.subr.bf16.mxu0 0
        %472 = vmatpush1.bf16.msra.mxu0 0
        %473 = vmatprep.subr.bf16.mxu0 0
        %474 = vmatpush1.bf16.msra.mxu0 0
        %475 = vmatprep.subr.bf16.mxu0 0
        %476 = vmatpush1.bf16.msra.mxu0 0
        %477 = vmatprep.mubr.bf16.mxu0 0
        %478 = vmatmul.mubr.bf16.gmra.mrb[0].mxu0 %v437
        %v479 = vpop.f32.mrb[0].mxu0
        %v480 = vadd.f32 %v433, %v479
        %v481 = vpop.f32.mrb[0].mxu0
        %v482 = vadd.f32 %v433, %v481
        %v483 = vpop.f32.mrb[0].mxu0
        %v484 = vpop.f32.mrb[0].mxu0
        %485 = vdwg.mxu0
        %v486 = vmax.f32 %v480, 0.0
        %v487 = vmax.f32 %v482, 0.0
        %vm488 = vcmp.ge.s32.totalorder %v367, 32
        %vm489 = vcmp.ge.s32.totalorder %v368, 32
        %vm490 = vmor %vm344, %vm488
        %vm491 = vmor %vm344, %vm489
        %v492 = vsel %vm490, 1, 0
        %v493 = vsel %vm491, 1, 0
        %vm494 = vcmp.eq.s32.totalorder %v492, 1
        %vm495 = vcmp.eq.s32.totalorder %v493, 1
        %v496 = vsel %vm494, %v486, 0.0
        %v497 = vsel %vm495, %v487, 0.0
        %500 = vrot.lane.b32.xlu0 %v496, 2
        %v501 = vpop.permute.xlu0 %500
        %502 = vrot.lane.b32.xlu0 %v497, 2
        %v503 = vpop.permute.xlu0 %502
        %v504 = vsel %vm361, %v501, %v503
        %v507 = vsel %vm361, 0.0, %v501
        %v508 = vsel %vm397, %v507, 0.0
        %v509 = vsel %vm398, %v504, 0.0
        %v510 = vpack.c.bf16 %v508, %v508
        %v511 = vpack.c.bf16 %v509, %v509
        %v514 = vrot.slane %v510, 4
        %v515 = vrot.slane %v511, 4
        %516 = vrot.lane.b32.xlu0 %v514, 112
        %v517 = vpop.permute.xlu0 %516
        %518 = vrot.lane.b32.xlu0 %v515, 112
        %v519 = vpop.permute.xlu0 %518
        %v520 = vsel %vm411, %v517, %v519
        %521 = vrot.lane.b32.xlu0 %v510, 96
        %v522 = vpop.permute.xlu0 %521
        %523 = vrot.lane.b32.xlu0 %v511, 96
        %v524 = vpop.permute.xlu0 %523
        %v525 = vsel %vm417, %v522, %v524
        %v528 = vsel %vm419, %v510, %v520
        %v530 = vld [vmem:[%s4] sm:$0xf]
        %v531 = vld [vmem:[%s5] sm:$0xff]
        %533 = vset.pattern.permute.xlu0 0
        %534 = vperm.xlu0 %533, %v531
        %v535 = vpop.permute.xlu0 %534
        %v538 = vsel %vm435, %v530, 0
        %v541 = vsel %vm419, %v525, 0
        %543 = vmatprep.subr.bf16.mxu0 0
        %544 = vmatpush1.bf16.msra.mxu0 %v528
        %545 = vmatprep.subr.bf16.mxu0 0
        %546 = vmatpush1.bf16.msra.mxu0 %v541
        %547 = vmatprep.subr.bf16.mxu0 0
        %548 = vmatpush1.bf16.msra.mxu0 0
        %549 = vmatprep.subr.bf16.mxu0 0
        %550 = vmatpush1.bf16.msra.mxu0 0
        %551 = vmatprep.subr.bf16.mxu0 0
        %552 = vmatpush1.bf16.msra.mxu0 0
        %553 = vmatprep.subr.bf16.mxu0 0
        %554 = vmatpush1.bf16.msra.mxu0 0
        %555 = vmatprep.subr.bf16.mxu0 0
        %556 = vmatpush1.bf16.msra.mxu0 0
        %557 = vmatprep.subr.bf16.mxu0 0
        %558 = vmatpush1.bf16.msra.mxu0 0
        %559 = vmatprep.subr.bf16.mxu0 0
        %560 = vmatpush1.bf16.msra.mxu0 0
        %561 = vmatprep.subr.bf16.mxu0 0
        %562 = vmatpush1.bf16.msra.mxu0 0
        %563 = vmatprep.subr.bf16.mxu0 0
        %564 = vmatpush1.bf16.msra.mxu0 0
        %565 = vmatprep.subr.bf16.mxu0 0
        %566 = vmatpush1.bf16.msra.mxu0 0
        %567 = vmatprep.subr.bf16.mxu0 0
        %568 = vmatpush1.bf16.msra.mxu0 0
        %569 = vmatprep.subr.bf16.mxu0 0
        %570 = vmatpush1.bf16.msra.mxu0 0
        %571 = vmatprep.subr.bf16.mxu0 0
        %572 = vmatpush1.bf16.msra.mxu0 0
        %573 = vmatprep.subr.bf16.mxu0 0
        %574 = vmatpush1.bf16.msra.mxu0 0
        %575 = vmatprep.mubr.bf16.mxu0 0
        %576 = vmatmul.mubr.bf16.gmra.mrb[0].mxu0 %v538
        %v577 = vpop.f32.mrb[0].mxu0
        %v578 = vadd.f32 %v535, %v577
        %v579 = vpop.f32.mrb[0].mxu0
        %v580 = vpop.f32.mrb[0].mxu0
        %v581 = vpop.f32.mrb[0].mxu0
        %582 = vdwg.mxu0
        %v583 = vmax.f32 %v578, 0.0
        %v584 = vadd.f32 %v583, %v339
        %v585 = vmax.f32 %v584, 0.0
        %586 = vst [vmem:[%s334] sm:$0xff] %v585
        %s587 = sand.u32 %s194, 1
        %s588 = scalar_lea.sflag [#allocation4], %s587
        %s589 = sand.u32 %s194, 1
        %s590 = smul.addr %s589, 8
        %s591 = scalar_lea.vmem [#allocation7], %s590
        // Predicated region
        $region53: #{tpu_custom_call.1} parent=43 // pred_check
          %p592 = pneg %p204
        $region54: #{tpu_custom_call.1} parent=43 // pred_check_branch
          %594 = sbr.rel (%p592) target = $region56
        $region55: #{tpu_custom_call.1} parent=43 // pred_region
          %s596 = ssub.s32 128, 128
          %597 = vsyncadd %s588, %s596
          %s598 = smul.addr %s30, 2
          %s599 = sadd.s32 %s31, %s598
          %s600 = smul.addr %s599, 128
          %s601 = scalar_lea.hbm %s6, %s600
          %s603 = sshll.u32 %s591, 4
          %s604 = int_to_ptr.vmem [resolvable:$true] %s603
          %606 = dma.vmem_to_hbm [thread:$0]  %s604, 128, %s601, %s588
        $region56: #{tpu_custom_call.1} parent=43 // pred_fallthru
          _
      $region44: #{tpu_custom_call.1} parent=5 // pred_fallthru
        _
      %p607 = scmp.le.s32.totalorder 2, %s21
      // Predicated region
      $region57: #{tpu_custom_call.1} parent=5 // pred_check
        %p608 = pneg %p607
      $region58: #{tpu_custom_call.1} parent=5 // pred_check_branch
        %610 = sbr.rel (%p608) target = $region60
      $region59: #{tpu_custom_call.1} parent=5 // pred_region
        %s611 = ssub.s32 %s21, 2
        // Predicated region
        $region61: #{tpu_custom_call.1} parent=59 // pred_check
          %p612 = pneg %p210
        $region62: #{tpu_custom_call.1} parent=59 // pred_check_branch
          %614 = sbr.rel (%p612) target = $region64
        $region63: #{tpu_custom_call.1} parent=59 // pred_region
          %s615 = sand.u32 %s195, 1
          %s616 = scalar_lea.sflag [#allocation4], %s615
          %s617 = sand.u32 %s195, 1
          %s618 = smul.addr %s617, 8
          %s619 = scalar_lea.vmem [#allocation7], %s618
          %620 = dma.done %s616, 128
        $region64: #{tpu_custom_call.1} parent=59 // pred_fallthru
          _
      $region60: #{tpu_custom_call.1} parent=5 // pred_fallthru
        _
    $region6: #{tpu_custom_call.1} parent=1 // loop_footer
      %s25 = sadd.s32 1, %s21
    $region7: #{tpu_custom_call.1} parent=1 // loop_footer_branch
      %20 = sbr.rel target = $region3
    $region8: #{tpu_custom_call.1} parent=1 // loop_exit
      _
    %621 = vsyncpa [#allocation3], 1
    %s622 = scalar_lea.sflag [#allocation3], 1
    %623 = vsyncpa %s622, 1
    %624 = vsyncpa [#allocation6], 1
    %s625 = scalar_lea.sflag [#allocation6], 1
    %626 = vsyncpa %s625, 1
    %627 = vsyncpa [#allocation4], 1
    %s628 = scalar_lea.sflag [#allocation4], 1
    %629 = vsyncpa %s628, 1

</llo_original>
